<compile_context>
chip_gen: v7x
topology: tpu7x:2x2x1
jax: 0.10.0
libtpu: 0.0.40
codegen_flags: <defaults>
</compile_context>

<pallas_src>
import jax
import jax.numpy as jnp
from jax import lax
from jax.experimental import pallas as pl
from jax.experimental.pallas import tpu as pltpu


def _linear_bias_relu_kernel(x_ref, w_ref, b_ref, o_ref):
    # x: (TB, K), w: (N, K), b: (1, N)  ->  o: (TB, N)
    y = lax.dot_general(
        x_ref[...], w_ref[...],
        dimension_numbers=(((1,), (1,)), ((), ())),
        preferred_element_type=jnp.float32,
    )
    y = y + b_ref[...]                       # (1, N) broadcasts over batch rows
    o_ref[...] = jnp.maximum(y, 0.0).astype(o_ref.dtype)


def _round_up(a, m):
    return ((a + m - 1) // m) * m


def linear_sub_relu(x, w, b, other, *, tb=4096, use_kernel=None):
    """x: (B, K) f32, w: (N, K) (PyTorch Linear layout), b/other: (N,) -> (B, N)."""
    B, K = x.shape
    N = w.shape[0]

    # Fold b - other into a single effective bias (parameter-prep time, free).
    bias_eff = (b - other).reshape(1, N).astype(jnp.float32)

    if use_kernel is None:
        use_kernel = B >= 256
    if not use_kernel:
        # Tiny-batch fast path: one XLA fusion, no launch/DMA fixed cost.
        return jnp.maximum(x @ w.T + bias_eff, 0.0).astype(x.dtype)

    # Batch tile: multiple of 128; cap so the grid keeps >= 2 steps (v7x has
    # two TensorCores and each gets its own share of the "parallel" axis).
    b128 = _round_up(B, 128)
    tb_eff = max(128, min(tb, _round_up(pl.cdiv(b128, 2), 128)))
    Bp = _round_up(B, tb_eff)

    # Pad the batch (padded rows give relu(bias_eff); sliced off below).
    x_pad = jnp.pad(x, ((0, Bp - B), (0, 0))) if Bp != B else x

    out = pl.pallas_call(
        _linear_bias_relu_kernel,
        out_shape=jax.ShapeDtypeStruct((Bp, N), x.dtype),
        grid=(Bp // tb_eff,),
        in_specs=[
            pl.BlockSpec((tb_eff, K), lambda i: (i, 0)),   # x: natural layout, streams over batch
            pl.BlockSpec((N, K), lambda i: (0, 0)),        # weight: VMEM-resident
            pl.BlockSpec((1, N), lambda i: (0, 0)),        # fused bias: VMEM-resident
        ],
        out_specs=pl.BlockSpec((tb_eff, N), lambda i: (i, 0)),
        compiler_params=pltpu.CompilerParams(
            dimension_semantics=("parallel",)),
    )(x_pad, w, bias_eff)

    return out[:B]


if __name__ == "__main__":
    key = jax.random.PRNGKey(0)
    k_x, k_w, k_b, k_o, k_xb = jax.random.split(key, 5)

    in_features, out_features = 32, 16

    # PyTorch Linear stores weight as (out_features, in_features); used as-is.
    w = jax.random.normal(k_w, (out_features, in_features), dtype=jnp.float32) * 0.1
    b = jax.random.normal(k_b, (out_features,), dtype=jnp.float32) * 0.1
    other = jax.random.normal(k_o, (out_features,), dtype=jnp.float32) * 0.1

    # 1) The module's actual shape (B=1): goes through the fused fast path.
    x1 = jax.random.normal(k_x, (1, in_features), dtype=jnp.float32)
    out_small = jax.block_until_ready(linear_sub_relu(x1, w, b, other))
    ref_small = jnp.maximum(x1 @ w.T + b - other, 0.0)
    assert out_small.shape == (1, out_features)
    assert jnp.allclose(out_small, ref_small, atol=1e-5, rtol=1e-5)

    # 2) A batched run forced through the Pallas kernel (exercises tiling,
    #    padding of a non-128-multiple batch, and the tail slice).
    batch = 300
    xb = jax.random.normal(k_xb, (batch, in_features), dtype=jnp.float32)
    out_big = jax.block_until_ready(linear_sub_relu(xb, w, b, other, use_kernel=True))
    ref_big = jnp.maximum(xb @ w.T + b - other, 0.0)
    assert out_big.shape == (batch, out_features)
    assert jnp.allclose(out_big, ref_big, atol=1e-5, rtol=1e-5)

    print("KERNEL_OK")
</pallas_src>

<mosaic_0001>
module attributes {stable_mosaic.version = 11 : i64} {
  func.func @_linear_bias_relu_kernel(%arg0: i32, %arg1: memref<256x32xf32, #tpu.memory_space<vmem>>, %arg2: memref<16x32xf32, #tpu.memory_space<vmem>>, %arg3: memref<1x16xf32, #tpu.memory_space<vmem>>, %arg4: memref<256x16xf32, #tpu.memory_space<vmem>>) attributes {dimension_semantics = [#tpu.dimension_semantics<parallel>], iteration_bounds = array<i64: 2>, scalar_prefetch = 0 : i64, scratch_operands = 0 : i64, tpu.core_type = #tpu.core_type<tc>, window_params = [{transform_indices = @transform_0, window_bounds = array<i64: 256, 32>}, {pipeline_mode = #tpu.pipeline_mode<synchronous>, transform_indices = @transform_1, window_bounds = array<i64: 16, 32>}, {pipeline_mode = #tpu.pipeline_mode<synchronous>, transform_indices = @transform_2, window_bounds = array<i64: 1, 16>}, {transform_indices = @transform_3, window_bounds = array<i64: 256, 16>}]} {
    %c0 = arith.constant 0 : index
    %c0_0 = arith.constant 0 : index
    %0 = vector.load %arg1[%c0, %c0_0] : memref<256x32xf32, #tpu.memory_space<vmem>>, vector<256x32xf32>
    %c0_1 = arith.constant 0 : index
    %c0_2 = arith.constant 0 : index
    %1 = vector.load %arg2[%c0_1, %c0_2] : memref<16x32xf32, #tpu.memory_space<vmem>>, vector<16x32xf32>
    %cst = arith.constant dense<0.000000e+00> : vector<256x16xf32>
    %2 = tpu.matmul %0, %1, %cst {dimension_numbers = #tpu.dot_dimension_numbers<[1], [1], [0], [0], [0, 0, 1, 0], [], []>} : vector<256x32xf32>, vector<16x32xf32>, vector<256x16xf32> -> vector<256x16xf32>
    %c0_3 = arith.constant 0 : index
    %c0_4 = arith.constant 0 : index
    %3 = vector.load %arg3[%c0_3, %c0_4] : memref<1x16xf32, #tpu.memory_space<vmem>>, vector<1x16xf32>
    %4 = vector.broadcast %3 : vector<1x16xf32> to vector<256x16xf32>
    %5 = arith.addf %2, %4 : vector<256x16xf32>
    %cst_5 = arith.constant 0.000000e+00 : f32
    %6 = vector.broadcast %cst_5 : f32 to vector<256x16xf32>
    %7 = arith.maximumf %5, %6 : vector<256x16xf32>
    %c0_6 = arith.constant 0 : index
    %c0_7 = arith.constant 0 : index
    %8 = vector.load %arg4[%c0_6, %c0_7] : memref<256x16xf32, #tpu.memory_space<vmem>>, vector<256x16xf32>
    tpu.vector_store %arg4[%c0_6, %c0_7], %7 {strides = array<i32>} : memref<256x16xf32, #tpu.memory_space<vmem>>, vector<256x16xf32>,
    return
  }
  func.func @transform_0(%arg0: i32) -> (i32, i32) {
    %c0_i32 = arith.constant 0 : i32
    %c0_i32_0 = arith.constant 0 : i32
    return %arg0, %c0_i32 : i32, i32
  }
  func.func @transform_1(%arg0: i32) -> (i32, i32) {
    %c0_i32 = arith.constant 0 : i32
    %c0_i32_0 = arith.constant 0 : i32
    %c0_i32_1 = arith.constant 0 : i32
    return %c0_i32, %c0_i32_0 : i32, i32
  }
  func.func @transform_2(%arg0: i32) -> (i32, i32) {
    %c0_i32 = arith.constant 0 : i32
    %c0_i32_0 = arith.constant 0 : i32
    %c0_i32_1 = arith.constant 0 : i32
    return %c0_i32, %c0_i32_0 : i32, i32
  }
  func.func @transform_3(%arg0: i32) -> (i32, i32) {
    %c0_i32 = arith.constant 0 : i32
    %c0_i32_0 = arith.constant 0 : i32
    return %arg0, %c0_i32 : i32, i32
  }
}

</mosaic_0001>

<llo_original>
// kernel: tpu_custom_call.1
$region0: #{tpu_custom_call.1}
  #allocation0 [shape = 'u32[]', space=smem, size = 0x4, offset = 0x4, fixed_abs, tag = 'smem constant byte address 0x4 - core index']
  #allocation1 [shape = 'u32[144,128]{1,0:T(1,128)}', space=vmem, size = 0x12000, scoped, tag = 'internal scratch']
  %s0 = inlined_call_operand.vmem [shape: f32[512,32], index: 0, kind: input, shape index: {}]
  %s1 = inlined_call_operand.vmem [shape: f32[16,32], index: 1, kind: input, shape index: {}]
  %s2 = inlined_call_operand.vmem [shape: f32[1,16], index: 2, kind: input, shape index: {}]
  %s3 = inlined_call_operand.vmem [shape: f32[512,16], index: 3, kind: output, shape index: {}]
  %s4 = sld [smem:[#allocation0]]
  $region45: #{tpu_custom_call.1} parent=0
    _
  %s6 = ssub.s32 1, %s4
  %s7 = scalar_select 0, %s6, %s4
  loop: start=0, step=1, limit=4
  $region2: #{tpu_custom_call.1} parent=0 // loop_pre_header
    _
  $region3: #{tpu_custom_call.1} parent=0 // loop_header
    %s9 = sphi 0, %s13
    %p10 = scmp.ge.s32.totalorder %s9, 4
    %s19 = sphi 0, %s21
    %s22 = sphi 0, %s19
    %s23 = sphi 0, %s22
    %s39 = sphi 0, %s23
    %s43 = sphi 0, %s43
    %s45 = sphi 0, %s43
    %s46 = sphi 0, %s45
    %s60 = sphi 0, %s46
    %s64 = sphi 0, %s64
    %s66 = sphi 0, %s64
    %s67 = sphi 0, %s66
    %s81 = sphi 0, %s67
    %s87 = sphi 0, %s89
    %s90 = sphi 0, %s87
    %s91 = sphi 0, %s90
    %s107 = sphi 0, %s91
  $region4: #{tpu_custom_call.1} parent=0 // loop_header_branch
    %12 = sbr.rel (%p10) target = $region8
  $region5: #{tpu_custom_call.1} parent=0 // loop_body
    %s14 = ssub.s32 %s9, 1
    %s15 = ssub.s32 %s9, 2
    %s16 = sadd.s32 %s9, 1
    %s17 = ssub.s32 %s9, %s16
    %p18 = scmp.eq.s32.totalorder %s17, 0
    %s20 = sadd.s32 %s19, 1
    %s21 = scalar_select %p18, %s19, %s20
    %p24 = pneg %p18
    %p25 = scmp.eq.s32.totalorder %s9, 1
    %p26 = por %p24, %p25
    %p27 = scmp.ne.s32.totalorder %s19, %s22
    %p28 = scmp.eq.s32.totalorder %s9, 0
    %p29 = por %p27, %p28
    %p30 = scmp.ne.s32.totalorder %s19, %s22
    %p31 = scmp.eq.s32.totalorder %s14, 1
    %p32 = por %p30, %p31
    %p33 = scmp.ne.s32.totalorder %s22, %s23
    %p34 = scmp.eq.s32.totalorder %s14, 0
    %p35 = por %p33, %p34
    %p36 = scmp.ne.s32.totalorder %s22, %s23
    %p37 = scmp.eq.s32.totalorder %s15, 1
    %p38 = por %p36, %p37
    %p40 = scmp.ne.s32.totalorder %s23, %s39
    %p41 = scmp.eq.s32.totalorder %s15, 0
    %p42 = por %p40, %p41
    %s44 = sadd.s32 %s43, 1
    %p47 = scmp.eq.s32.totalorder %s9, 1
    %p48 = scmp.ne.s32.totalorder %s43, %s45
    %p49 = scmp.eq.s32.totalorder %s9, 0
    %p50 = por %p48, %p49
    %p51 = scmp.ne.s32.totalorder %s43, %s45
    %p52 = scmp.eq.s32.totalorder %s14, 1
    %p53 = por %p51, %p52
    %p54 = scmp.ne.s32.totalorder %s45, %s46
    %p55 = scmp.eq.s32.totalorder %s14, 0
    %p56 = por %p54, %p55
    %p57 = scmp.ne.s32.totalorder %s45, %s46
    %p58 = scmp.eq.s32.totalorder %s15, 1
    %p59 = por %p57, %p58
    %p61 = scmp.ne.s32.totalorder %s46, %s60
    %p62 = scmp.eq.s32.totalorder %s15, 0
    %p63 = por %p61, %p62
    %s65 = sadd.s32 %s64, 1
    %p68 = scmp.eq.s32.totalorder %s9, 1
    %p69 = scmp.ne.s32.totalorder %s64, %s66
    %p70 = scmp.eq.s32.totalorder %s9, 0
    %p71 = por %p69, %p70
    %p72 = scmp.ne.s32.totalorder %s64, %s66
    %p73 = scmp.eq.s32.totalorder %s14, 1
    %p74 = por %p72, %p73
    %p75 = scmp.ne.s32.totalorder %s66, %s67
    %p76 = scmp.eq.s32.totalorder %s14, 0
    %p77 = por %p75, %p76
    %p78 = scmp.ne.s32.totalorder %s66, %s67
    %p79 = scmp.eq.s32.totalorder %s15, 1
    %p80 = por %p78, %p79
    %p82 = scmp.ne.s32.totalorder %s67, %s81
    %p83 = scmp.eq.s32.totalorder %s15, 0
    %p84 = por %p82, %p83
    %s85 = ssub.s32 %s9, %s16
    %p86 = scmp.eq.s32.totalorder %s85, 0
    %s88 = sadd.s32 %s87, 1
    %s89 = scalar_select %p86, %s87, %s88
    %p92 = pneg %p86
    %p93 = scmp.eq.s32.totalorder %s9, 1
    %p94 = por %p92, %p93
    %p95 = scmp.ne.s32.totalorder %s87, %s90
    %p96 = scmp.eq.s32.totalorder %s9, 0
    %p97 = por %p95, %p96
    %p98 = scmp.ne.s32.totalorder %s87, %s90
    %p99 = scmp.eq.s32.totalorder %s14, 1
    %p100 = por %p98, %p99
    %p101 = scmp.ne.s32.totalorder %s90, %s91
    %p102 = scmp.eq.s32.totalorder %s14, 0
    %p103 = por %p101, %p102
    %p104 = scmp.ne.s32.totalorder %s90, %s91
    %p105 = scmp.eq.s32.totalorder %s15, 1
    %p106 = por %p104, %p105
    %p108 = scmp.ne.s32.totalorder %s91, %s107
    %p109 = scmp.eq.s32.totalorder %s15, 0
    %p110 = por %p108, %p109
    %p111 = scmp.le.s32.totalorder 1, %s9
    %p112 = scmp.lt.s32.totalorder %s9, 3
    %p113 = pnand %p111, %p112
    %p114 = pneg %p113
    // Predicated region
    $region9: #{tpu_custom_call.1} parent=5 // pred_check
      _
    $region10: #{tpu_custom_call.1} parent=5 // pred_check_branch
      %116 = sbr.rel (%p113) target = $region12
    $region11: #{tpu_custom_call.1} parent=5 // pred_region
      %s117 = ssub.s32 %s9, 1
      // Predicated region
      $region13: #{tpu_custom_call.1} parent=11 // pred_check
        %p118 = pneg %p56
      $region14: #{tpu_custom_call.1} parent=11 // pred_check_branch
        %120 = sbr.rel (%p118) target = $region16
      $region15: #{tpu_custom_call.1} parent=11 // pred_region
        _
      $region16: #{tpu_custom_call.1} parent=11 // pred_fallthru
        _
      // Predicated region
      $region17: #{tpu_custom_call.1} parent=11 // pred_check
        %p121 = pneg %p77
      $region18: #{tpu_custom_call.1} parent=11 // pred_check_branch
        %123 = sbr.rel (%p121) target = $region20
      $region19: #{tpu_custom_call.1} parent=11 // pred_region
        _
      $region20: #{tpu_custom_call.1} parent=11 // pred_fallthru
        _
    $region12: #{tpu_custom_call.1} parent=5 // pred_fallthru
      _
    %p124 = scmp.lt.s32.totalorder %s9, 2
    // Predicated region
    $region21: #{tpu_custom_call.1} parent=5 // pred_check
      %p125 = pneg %p124
    $region22: #{tpu_custom_call.1} parent=5 // pred_check_branch
      %127 = sbr.rel (%p125) target = $region24
    $region23: #{tpu_custom_call.1} parent=5 // pred_region
      // Predicated region
      $region25: #{tpu_custom_call.1} parent=23 // pred_check
        %p128 = pneg %p29
      $region26: #{tpu_custom_call.1} parent=23 // pred_check_branch
        %130 = sbr.rel (%p128) target = $region28
      $region27: #{tpu_custom_call.1} parent=23 // pred_region
        %s131 = smul.u32 32, %s9
        %p132 = scmp.lt.s32.totalorder %s131, 63
        %s133 = scalar_select %p132, %s131, 63
        %s134 = smul.addr %s133, 8
        %s135 = scalar_lea.vmem %s0, %s134
        %s136 = smul.u32 32, %s9
      $region28: #{tpu_custom_call.1} parent=23 // pred_fallthru
        _
    $region24: #{tpu_custom_call.1} parent=5 // pred_fallthru
      _
    %p137 = scmp.le.s32.totalorder 1, %s9
    %p138 = scmp.lt.s32.totalorder %s9, 3
    %p139 = pnand %p137, %p138
    %p140 = pneg %p139
    // Predicated region
    $region29: #{tpu_custom_call.1} parent=5 // pred_check
      _
    $region30: #{tpu_custom_call.1} parent=5 // pred_check_branch
      %142 = sbr.rel (%p139) target = $region32
    $region31: #{tpu_custom_call.1} parent=5 // pred_region
      %s143 = ssub.s32 %s9, 1
      %s144 = smul.u32 32, %s14
      %p145 = scmp.lt.s32.totalorder %s144, 63
      %s146 = scalar_select %p145, %s144, 63
      %s147 = smul.addr %s146, 8
      %s148 = scalar_lea.vmem %s0, %s147
      %p149 = pneg %p35
      %p150 = pneg %p32
      %p151 = pneg %p56
      %p152 = pneg %p53
      %p153 = pneg %p77
      %p154 = pneg %p74
      %p155 = pneg %p103
      %p156 = pneg %p100
      %s157 = smul.u32 32, %s14
      %p158 = scmp.lt.s32.totalorder %s157, 63
      %s159 = scalar_select %p158, %s157, 63
      %s160 = smul.addr %s159, 8
      %s161 = scalar_lea.vmem %s3, %s160
      %s162 = smul.u32 32, %s14
      %p163 = scmp.lt.s32.totalorder %s162, 63
      %s164 = scalar_select %p163, %s162, 63
      %s165 = smul.addr %s164, 8
      %s166 = scalar_lea.vmem %s0, %s165
      %s167 = smul.u32 32, %s14
      %s168 = smul.u32 32, %s14
      %p169 = scmp.lt.s32.totalorder %s168, 63
      %s170 = scalar_select %p169, %s168, 63
      %s171 = smul.addr %s170, 8
      %s172 = scalar_lea.vmem %s3, %s171
      %s173 = smul.u32 32, %s14
      %v174 = vld [vmem:[%s166] sm:$0xff]
      %v175 = vld [vmem:[%s166 + $0x8] sm:$0xff]
      %v176 = vld [vmem:[%s166 + $0x10] sm:$0xff]
      %v177 = vld [vmem:[%s166 + $0x18] sm:$0xff]
      %v178 = vld [vmem:[%s166 + $0x20] sm:$0xff]
      %v179 = vld [vmem:[%s166 + $0x28] sm:$0xff]
      %v180 = vld [vmem:[%s166 + $0x30] sm:$0xff]
      %v181 = vld [vmem:[%s166 + $0x38] sm:$0xff]
      %v182 = vld [vmem:[%s166 + $0x40] sm:$0xff]
      %v183 = vld [vmem:[%s166 + $0x48] sm:$0xff]
      %v184 = vld [vmem:[%s166 + $0x50] sm:$0xff]
      %v185 = vld [vmem:[%s166 + $0x58] sm:$0xff]
      %v186 = vld [vmem:[%s166 + $0x60] sm:$0xff]
      %v187 = vld [vmem:[%s166 + $0x68] sm:$0xff]
      %v188 = vld [vmem:[%s166 + $0x70] sm:$0xff]
      %v189 = vld [vmem:[%s166 + $0x78] sm:$0xff]
      %v190 = vld [vmem:[%s166 + $0x80] sm:$0xff]
      %v191 = vld [vmem:[%s166 + $0x88] sm:$0xff]
      %v192 = vld [vmem:[%s166 + $0x90] sm:$0xff]
      %v193 = vld [vmem:[%s166 + $0x98] sm:$0xff]
      %v194 = vld [vmem:[%s166 + $0xa0] sm:$0xff]
      %v195 = vld [vmem:[%s166 + $0xa8] sm:$0xff]
      %v196 = vld [vmem:[%s166 + $0xb0] sm:$0xff]
      %v197 = vld [vmem:[%s166 + $0xb8] sm:$0xff]
      %v198 = vld [vmem:[%s166 + $0xc0] sm:$0xff]
      %v199 = vld [vmem:[%s166 + $0xc8] sm:$0xff]
      %v200 = vld [vmem:[%s166 + $0xd0] sm:$0xff]
      %v201 = vld [vmem:[%s166 + $0xd8] sm:$0xff]
      %v202 = vld [vmem:[%s166 + $0xe0] sm:$0xff]
      %v203 = vld [vmem:[%s166 + $0xe8] sm:$0xff]
      %v204 = vld [vmem:[%s166 + $0xf0] sm:$0xff]
      %v205 = vld [vmem:[%s166 + $0xf8] sm:$0xff]
      %v206 = vld [vmem:[%s1] sm:$0xff]
      %v207 = vld [vmem:[%s1 + $0x8] sm:$0xff]
      %v208 = vld [vmem:[%s2] sm:$0x1]
      %v210 = vlaneseq
      %v211 = vshrl.u32 %v210, 7
      %v212 = vsub.s32 0, %v211
      %v213 = vrot.slane %v208, %v212
      %vm215 = vcmask 261120
      %v217 = vsel %vm215, %v174, 0
      %v220 = vsel %vm215, %v175, 0
      %v223 = vsel %vm215, %v176, 0
      %v226 = vsel %vm215, %v177, 0
      %v229 = vsel %vm215, %v178, 0
      %v232 = vsel %vm215, %v179, 0
      %v235 = vsel %vm215, %v180, 0
      %v238 = vsel %vm215, %v181, 0
      %v241 = vsel %vm215, %v182, 0
      %v244 = vsel %vm215, %v183, 0
      %v247 = vsel %vm215, %v184, 0
      %v250 = vsel %vm215, %v185, 0
      %v253 = vsel %vm215, %v186, 0
      %v256 = vsel %vm215, %v187, 0
      %v259 = vsel %vm215, %v188, 0
      %v262 = vsel %vm215, %v189, 0
      %v265 = vsel %vm215, %v190, 0
      %v268 = vsel %vm215, %v191, 0
      %v271 = vsel %vm215, %v192, 0
      %v274 = vsel %vm215, %v193, 0
      %v277 = vsel %vm215, %v194, 0
      %v280 = vsel %vm215, %v195, 0
      %v283 = vsel %vm215, %v196, 0
      %v286 = vsel %vm215, %v197, 0
      %v289 = vsel %vm215, %v198, 0
      %v292 = vsel %vm215, %v199, 0
      %v295 = vsel %vm215, %v200, 0
      %v298 = vsel %vm215, %v201, 0
      %v301 = vsel %vm215, %v202, 0
      %v304 = vsel %vm215, %v203, 0
      %v307 = vsel %vm215, %v204, 0
      %v310 = vsel %vm215, %v205, 0
      %v313 = vsel %vm215, %v206, 0
      %v316 = vsel %vm215, %v207, 0
      %318 = vmatprep.subr.mxu0 0.0
      %319 = vmatpush1.xpose.msra.mxu0 %v313
      %320 = vmatprep.subr.mxu0 0.0
      %321 = vmatpush1.xpose.msra.mxu0 %v316
      %322 = vmatprep.subr.mxu0 0.0
      %323 = vmatpush1.xpose.msra.mxu0 0.0
      %324 = vmatprep.subr.mxu0 0.0
      %325 = vmatpush1.xpose.msra.mxu0 0.0
      %326 = vmatprep.subr.mxu0 0.0
      %327 = vmatpush1.xpose.msra.mxu0 0.0
      %328 = vmatprep.subr.mxu0 0.0
      %329 = vmatpush1.xpose.msra.mxu0 0.0
      %330 = vmatprep.subr.mxu0 0.0
      %331 = vmatpush1.xpose.msra.mxu0 0.0
      %332 = vmatprep.subr.mxu0 0.0
      %333 = vmatpush1.xpose.msra.mxu0 0.0
      %334 = vmatprep.subr.mxu0 0.0
      %335 = vmatpush1.xpose.msra.mxu0 0.0
      %336 = vmatprep.subr.mxu0 0.0
      %337 = vmatpush1.xpose.msra.mxu0 0.0
      %338 = vmatprep.subr.mxu0 0.0
      %339 = vmatpush1.xpose.msra.mxu0 0.0
      %340 = vmatprep.subr.mxu0 0.0
      %341 = vmatpush1.xpose.msra.mxu0 0.0
      %342 = vmatprep.subr.mxu0 0.0
      %343 = vmatpush1.xpose.msra.mxu0 0.0
      %344 = vmatprep.subr.mxu0 0.0
      %345 = vmatpush1.xpose.msra.mxu0 0.0
      %346 = vmatprep.subr.mxu0 0.0
      %347 = vmatpush1.xpose.msra.mxu0 0.0
      %348 = vmatprep.subr.mxu0 0.0
      %349 = vmatpush1.xpose.msra.mxu0 0.0
      %350 = vmatprep.subr.mxu0 0.0
      %351 = vmatpush1.xpose.msra.mxu0 0.0
      %352 = vmatprep.subr.mxu0 0.0
      %353 = vmatpush1.xpose.msra.mxu0 0.0
      %354 = vmatprep.subr.mxu0 0.0
      %355 = vmatpush1.xpose.msra.mxu0 0.0
      %356 = vmatprep.subr.mxu0 0.0
      %357 = vmatpush1.xpose.msra.mxu0 0.0
      %358 = vmatprep.subr.mxu0 0.0
      %359 = vmatpush1.xpose.msra.mxu0 0.0
      %360 = vmatprep.subr.mxu0 0.0
      %361 = vmatpush1.xpose.msra.mxu0 0.0
      %362 = vmatprep.subr.mxu0 0.0
      %363 = vmatpush1.xpose.msra.mxu0 0.0
      %364 = vmatprep.subr.mxu0 0.0
      %365 = vmatpush1.xpose.msra.mxu0 0.0
      %366 = vmatprep.subr.mxu0 0.0
      %367 = vmatpush1.xpose.msra.mxu0 0.0
      %368 = vmatprep.subr.mxu0 0.0
      %369 = vmatpush1.xpose.msra.mxu0 0.0
      %370 = vmatprep.subr.mxu0 0.0
      %371 = vmatpush1.xpose.msra.mxu0 0.0
      %372 = vmatprep.subr.mxu0 0.0
      %373 = vmatpush1.xpose.msra.mxu0 0.0
      %374 = vmatprep.subr.mxu0 0.0
      %375 = vmatpush1.xpose.msra.mxu0 0.0
      %376 = vmatprep.subr.mxu0 0.0
      %377 = vmatpush1.xpose.msra.mxu0 0.0
      %378 = vmatprep.subr.mxu0 0.0
      %379 = vmatpush1.xpose.msra.mxu0 0.0
      %380 = vmatprep.subr.mxu0 0.0
      %381 = vmatpush1.xpose.msra.mxu0 0.0
      %382 = vmatprep.mubr.f32.mxu0 0.0
      %383 = vmatmul.mubr.f32.gmra.mrb[0].mxu0 %v217
      %v384 = vpop.f32.mrb[0].mxu0
      %v385 = vadd.f32 %v213, %v384
      %v386 = vpop.f32.mrb[0].mxu0
      %387 = vmatprep.mubr.f32.mxu0 0.0
      %388 = vmatmul.mubr.f32.gmra.mrb[0].mxu0 %v220
      %v389 = vpop.f32.mrb[0].mxu0
      %v390 = vadd.f32 %v213, %v389
      %v391 = vpop.f32.mrb[0].mxu0
      %392 = vmatprep.mubr.f32.mxu0 0.0
      %393 = vmatmul.mubr.f32.gmra.mrb[0].mxu0 %v223
      %v394 = vpop.f32.mrb[0].mxu0
      %v395 = vadd.f32 %v213, %v394
      %v396 = vpop.f32.mrb[0].mxu0
      %397 = vmatprep.mubr.f32.mxu0 0.0
      %398 = vmatmul.mubr.f32.gmra.mrb[0].mxu0 %v226
      %v399 = vpop.f32.mrb[0].mxu0
      %v400 = vadd.f32 %v213, %v399
      %v401 = vpop.f32.mrb[0].mxu0
      %402 = vmatprep.mubr.f32.mxu0 0.0
      %403 = vmatmul.mubr.f32.gmra.mrb[0].mxu0 %v229
      %v404 = vpop.f32.mrb[0].mxu0
      %v405 = vadd.f32 %v213, %v404
      %v406 = vpop.f32.mrb[0].mxu0
      %407 = vmatprep.mubr.f32.mxu0 0.0
      %408 = vmatmul.mubr.f32.gmra.mrb[0].mxu0 %v232
      %v409 = vpop.f32.mrb[0].mxu0
      %v410 = vadd.f32 %v213, %v409
      %v411 = vpop.f32.mrb[0].mxu0
      %412 = vmatprep.mubr.f32.mxu0 0.0
      %413 = vmatmul.mubr.f32.gmra.mrb[0].mxu0 %v235
      %v414 = vpop.f32.mrb[0].mxu0
      %v415 = vadd.f32 %v213, %v414
      %v416 = vpop.f32.mrb[0].mxu0
      %417 = vmatprep.mubr.f32.mxu0 0.0
      %418 = vmatmul.mubr.f32.gmra.mrb[0].mxu0 %v238
      %v419 = vpop.f32.mrb[0].mxu0
      %v420 = vadd.f32 %v213, %v419
      %v421 = vpop.f32.mrb[0].mxu0
      %422 = vmatprep.mubr.f32.mxu0 0.0
      %423 = vmatmul.mubr.f32.gmra.mrb[0].mxu0 %v241
      %v424 = vpop.f32.mrb[0].mxu0
      %v425 = vadd.f32 %v213, %v424
      %v426 = vpop.f32.mrb[0].mxu0
      %427 = vmatprep.mubr.f32.mxu0 0.0
      %428 = vmatmul.mubr.f32.gmra.mrb[0].mxu0 %v244
      %v429 = vpop.f32.mrb[0].mxu0
      %v430 = vadd.f32 %v213, %v429
      %v431 = vpop.f32.mrb[0].mxu0
      %432 = vmatprep.mubr.f32.mxu0 0.0
      %433 = vmatmul.mubr.f32.gmra.mrb[0].mxu0 %v247
      %v434 = vpop.f32.mrb[0].mxu0
      %v435 = vadd.f32 %v213, %v434
      %v436 = vpop.f32.mrb[0].mxu0
      %437 = vmatprep.mubr.f32.mxu0 0.0
      %438 = vmatmul.mubr.f32.gmra.mrb[0].mxu0 %v250
      %v439 = vpop.f32.mrb[0].mxu0
      %v440 = vadd.f32 %v213, %v439
      %v441 = vpop.f32.mrb[0].mxu0
      %442 = vmatprep.mubr.f32.mxu0 0.0
      %443 = vmatmul.mubr.f32.gmra.mrb[0].mxu0 %v253
      %v444 = vpop.f32.mrb[0].mxu0
      %v445 = vadd.f32 %v213, %v444
      %v446 = vpop.f32.mrb[0].mxu0
      %447 = vmatprep.mubr.f32.mxu0 0.0
      %448 = vmatmul.mubr.f32.gmra.mrb[0].mxu0 %v256
      %v449 = vpop.f32.mrb[0].mxu0
      %v450 = vadd.f32 %v213, %v449
      %v451 = vpop.f32.mrb[0].mxu0
      %452 = vmatprep.mubr.f32.mxu0 0.0
      %453 = vmatmul.mubr.f32.gmra.mrb[0].mxu0 %v259
      %v454 = vpop.f32.mrb[0].mxu0
      %v455 = vadd.f32 %v213, %v454
      %v456 = vpop.f32.mrb[0].mxu0
      %457 = vmatprep.mubr.f32.mxu0 0.0
      %458 = vmatmul.mubr.f32.gmra.mrb[0].mxu0 %v262
      %v459 = vpop.f32.mrb[0].mxu0
      %v460 = vadd.f32 %v213, %v459
      %v461 = vpop.f32.mrb[0].mxu0
      %462 = vmatprep.mubr.f32.mxu0 0.0
      %463 = vmatmul.mubr.f32.gmra.mrb[0].mxu0 %v265
      %v464 = vpop.f32.mrb[0].mxu0
      %v465 = vadd.f32 %v213, %v464
      %v466 = vpop.f32.mrb[0].mxu0
      %467 = vmatprep.mubr.f32.mxu0 0.0
      %468 = vmatmul.mubr.f32.gmra.mrb[0].mxu0 %v268
      %v469 = vpop.f32.mrb[0].mxu0
      %v470 = vadd.f32 %v213, %v469
      %v471 = vpop.f32.mrb[0].mxu0
      %472 = vmatprep.mubr.f32.mxu0 0.0
      %473 = vmatmul.mubr.f32.gmra.mrb[0].mxu0 %v271
      %v474 = vpop.f32.mrb[0].mxu0
      %v475 = vadd.f32 %v213, %v474
      %v476 = vpop.f32.mrb[0].mxu0
      %477 = vmatprep.mubr.f32.mxu0 0.0
      %478 = vmatmul.mubr.f32.gmra.mrb[0].mxu0 %v274
      %v479 = vpop.f32.mrb[0].mxu0
      %v480 = vadd.f32 %v213, %v479
      %v481 = vpop.f32.mrb[0].mxu0
      %482 = vmatprep.mubr.f32.mxu0 0.0
      %483 = vmatmul.mubr.f32.gmra.mrb[0].mxu0 %v277
      %v484 = vpop.f32.mrb[0].mxu0
      %v485 = vadd.f32 %v213, %v484
      %v486 = vpop.f32.mrb[0].mxu0
      %487 = vmatprep.mubr.f32.mxu0 0.0
      %488 = vmatmul.mubr.f32.gmra.mrb[0].mxu0 %v280
      %v489 = vpop.f32.mrb[0].mxu0
      %v490 = vadd.f32 %v213, %v489
      %v491 = vpop.f32.mrb[0].mxu0
      %492 = vmatprep.mubr.f32.mxu0 0.0
      %493 = vmatmul.mubr.f32.gmra.mrb[0].mxu0 %v283
      %v494 = vpop.f32.mrb[0].mxu0
      %v495 = vadd.f32 %v213, %v494
      %v496 = vpop.f32.mrb[0].mxu0
      %497 = vmatprep.mubr.f32.mxu0 0.0
      %498 = vmatmul.mubr.f32.gmra.mrb[0].mxu0 %v286
      %v499 = vpop.f32.mrb[0].mxu0
      %v500 = vadd.f32 %v213, %v499
      %v501 = vpop.f32.mrb[0].mxu0
      %502 = vmatprep.mubr.f32.mxu0 0.0
      %503 = vmatmul.mubr.f32.gmra.mrb[0].mxu0 %v289
      %v504 = vpop.f32.mrb[0].mxu0
      %v505 = vadd.f32 %v213, %v504
      %v506 = vpop.f32.mrb[0].mxu0
      %507 = vmatprep.mubr.f32.mxu0 0.0
      %508 = vmatmul.mubr.f32.gmra.mrb[0].mxu0 %v292
      %v509 = vpop.f32.mrb[0].mxu0
      %v510 = vadd.f32 %v213, %v509
      %v511 = vpop.f32.mrb[0].mxu0
      %512 = vmatprep.mubr.f32.mxu0 0.0
      %513 = vmatmul.mubr.f32.gmra.mrb[0].mxu0 %v295
      %v514 = vpop.f32.mrb[0].mxu0
      %v515 = vadd.f32 %v213, %v514
      %v516 = vpop.f32.mrb[0].mxu0
      %517 = vmatprep.mubr.f32.mxu0 0.0
      %518 = vmatmul.mubr.f32.gmra.mrb[0].mxu0 %v298
      %v519 = vpop.f32.mrb[0].mxu0
      %v520 = vadd.f32 %v213, %v519
      %v521 = vpop.f32.mrb[0].mxu0
      %522 = vmatprep.mubr.f32.mxu0 0.0
      %523 = vmatmul.mubr.f32.gmra.mrb[0].mxu0 %v301
      %v524 = vpop.f32.mrb[0].mxu0
      %v525 = vadd.f32 %v213, %v524
      %v526 = vpop.f32.mrb[0].mxu0
      %527 = vmatprep.mubr.f32.mxu0 0.0
      %528 = vmatmul.mubr.f32.gmra.mrb[0].mxu0 %v304
      %v529 = vpop.f32.mrb[0].mxu0
      %v530 = vadd.f32 %v213, %v529
      %v531 = vpop.f32.mrb[0].mxu0
      %532 = vmatprep.mubr.f32.mxu0 0.0
      %533 = vmatmul.mubr.f32.gmra.mrb[0].mxu0 %v307
      %v534 = vpop.f32.mrb[0].mxu0
      %v535 = vadd.f32 %v213, %v534
      %v536 = vpop.f32.mrb[0].mxu0
      %537 = vmatprep.mubr.f32.mxu0 0.0
      %538 = vmatmul.mubr.f32.gmra.mrb[0].mxu0 %v310
      %v539 = vpop.f32.mrb[0].mxu0
      %v540 = vadd.f32 %v213, %v539
      %v541 = vpop.f32.mrb[0].mxu0
      %542 = vdwg.mxu0
      %v543 = vmax.f32 %v385, 0.0
      %v544 = vmax.f32 %v390, 0.0
      %v545 = vmax.f32 %v395, 0.0
      %v546 = vmax.f32 %v400, 0.0
      %v547 = vmax.f32 %v405, 0.0
      %v548 = vmax.f32 %v410, 0.0
      %v549 = vmax.f32 %v415, 0.0
      %v550 = vmax.f32 %v420, 0.0
      %v551 = vmax.f32 %v425, 0.0
      %v552 = vmax.f32 %v430, 0.0
      %v553 = vmax.f32 %v435, 0.0
      %v554 = vmax.f32 %v440, 0.0
      %v555 = vmax.f32 %v445, 0.0
      %v556 = vmax.f32 %v450, 0.0
      %v557 = vmax.f32 %v455, 0.0
      %v558 = vmax.f32 %v460, 0.0
      %v559 = vmax.f32 %v465, 0.0
      %v560 = vmax.f32 %v470, 0.0
      %v561 = vmax.f32 %v475, 0.0
      %v562 = vmax.f32 %v480, 0.0
      %v563 = vmax.f32 %v485, 0.0
      %v564 = vmax.f32 %v490, 0.0
      %v565 = vmax.f32 %v495, 0.0
      %v566 = vmax.f32 %v500, 0.0
      %v567 = vmax.f32 %v505, 0.0
      %v568 = vmax.f32 %v510, 0.0
      %v569 = vmax.f32 %v515, 0.0
      %v570 = vmax.f32 %v520, 0.0
      %v571 = vmax.f32 %v525, 0.0
      %v572 = vmax.f32 %v530, 0.0
      %v573 = vmax.f32 %v535, 0.0
      %v574 = vmax.f32 %v540, 0.0
      %vm575 = vcmask 130048
      %576 = vst.msk [vmem:[%s172] sm:$0xff] %vm575, %v543
      %577 = vst.msk [vmem:[%s172 + $0x8] sm:$0xff] %vm575, %v544
      %578 = vst.msk [vmem:[%s172 + $0x10] sm:$0xff] %vm575, %v545
      %579 = vst.msk [vmem:[%s172 + $0x18] sm:$0xff] %vm575, %v546
      %580 = vst.msk [vmem:[%s172 + $0x20] sm:$0xff] %vm575, %v547
      %581 = vst.msk [vmem:[%s172 + $0x28] sm:$0xff] %vm575, %v548
      %582 = vst.msk [vmem:[%s172 + $0x30] sm:$0xff] %vm575, %v549
      %583 = vst.msk [vmem:[%s172 + $0x38] sm:$0xff] %vm575, %v550
      %584 = vst.msk [vmem:[%s172 + $0x40] sm:$0xff] %vm575, %v551
      %585 = vst.msk [vmem:[%s172 + $0x48] sm:$0xff] %vm575, %v552
      %586 = vst.msk [vmem:[%s172 + $0x50] sm:$0xff] %vm575, %v553
      %587 = vst.msk [vmem:[%s172 + $0x58] sm:$0xff] %vm575, %v554
      %588 = vst.msk [vmem:[%s172 + $0x60] sm:$0xff] %vm575, %v555
      %589 = vst.msk [vmem:[%s172 + $0x68] sm:$0xff] %vm575, %v556
      %590 = vst.msk [vmem:[%s172 + $0x70] sm:$0xff] %vm575, %v557
      %591 = vst.msk [vmem:[%s172 + $0x78] sm:$0xff] %vm575, %v558
      %592 = vst.msk [vmem:[%s172 + $0x80] sm:$0xff] %vm575, %v559
      %593 = vst.msk [vmem:[%s172 + $0x88] sm:$0xff] %vm575, %v560
      %594 = vst.msk [vmem:[%s172 + $0x90] sm:$0xff] %vm575, %v561
      %595 = vst.msk [vmem:[%s172 + $0x98] sm:$0xff] %vm575, %v562
      %596 = vst.msk [vmem:[%s172 + $0xa0] sm:$0xff] %vm575, %v563
      %597 = vst.msk [vmem:[%s172 + $0xa8] sm:$0xff] %vm575, %v564
      %598 = vst.msk [vmem:[%s172 + $0xb0] sm:$0xff] %vm575, %v565
      %599 = vst.msk [vmem:[%s172 + $0xb8] sm:$0xff] %vm575, %v566
      %600 = vst.msk [vmem:[%s172 + $0xc0] sm:$0xff] %vm575, %v567
      %601 = vst.msk [vmem:[%s172 + $0xc8] sm:$0xff] %vm575, %v568
      %602 = vst.msk [vmem:[%s172 + $0xd0] sm:$0xff] %vm575, %v569
      %603 = vst.msk [vmem:[%s172 + $0xd8] sm:$0xff] %vm575, %v570
      %604 = vst.msk [vmem:[%s172 + $0xe0] sm:$0xff] %vm575, %v571
      %605 = vst.msk [vmem:[%s172 + $0xe8] sm:$0xff] %vm575, %v572
      %606 = vst.msk [vmem:[%s172 + $0xf0] sm:$0xff] %vm575, %v573
      %607 = vst.msk [vmem:[%s172 + $0xf8] sm:$0xff] %vm575, %v574
      %s608 = smul.u32 32, %s14
      %p609 = scmp.lt.s32.totalorder %s608, 63
      %s610 = scalar_select %p609, %s608, 63
      %s611 = smul.addr %s610, 8
      %s612 = scalar_lea.vmem %s3, %s611
      // Predicated region
      $region33: #{tpu_custom_call.1} parent=31 // pred_check
        %p613 = pneg %p100
      $region34: #{tpu_custom_call.1} parent=31 // pred_check_branch
        %615 = sbr.rel (%p613) target = $region36
      $region35: #{tpu_custom_call.1} parent=31 // pred_region
        %s616 = smul.u32 32, %s14
      $region36: #{tpu_custom_call.1} parent=31 // pred_fallthru
        _
    $region32: #{tpu_custom_call.1} parent=5 // pred_fallthru
      _
    %p617 = scmp.le.s32.totalorder 2, %s9
    // Predicated region
    $region37: #{tpu_custom_call.1} parent=5 // pred_check
      %p618 = pneg %p617
    $region38: #{tpu_custom_call.1} parent=5 // pred_check_branch
      %620 = sbr.rel (%p618) target = $region40
    $region39: #{tpu_custom_call.1} parent=5 // pred_region
      %s621 = ssub.s32 %s9, 2
      // Predicated region
      $region41: #{tpu_custom_call.1} parent=39 // pred_check
        %p622 = pneg %p106
      $region42: #{tpu_custom_call.1} parent=39 // pred_check_branch
        %624 = sbr.rel (%p622) target = $region44
      $region43: #{tpu_custom_call.1} parent=39 // pred_region
        %s625 = smul.u32 32, %s15
        %p626 = scmp.lt.s32.totalorder %s625, 63
        %s627 = scalar_select %p626, %s625, 63
        %s628 = smul.addr %s627, 8
        %s629 = scalar_lea.vmem %s3, %s628
      $region44: #{tpu_custom_call.1} parent=39 // pred_fallthru
        _
    $region40: #{tpu_custom_call.1} parent=5 // pred_fallthru
      _
  $region6: #{tpu_custom_call.1} parent=0 // loop_footer
    %s13 = sadd.s32 1, %s9
  $region7: #{tpu_custom_call.1} parent=0 // loop_footer_branch
    %8 = sbr.rel target = $region3
  $region8: #{tpu_custom_call.1} parent=0 // loop_exit
    _

</llo_original>
